<compile_context>
chip_gen: v5e
topology: v5e:2x2
jax: 0.10.0
libtpu: 0.0.40
codegen_flags: <defaults>
</compile_context>

<pallas_src>
import math
import functools

import jax
import jax.numpy as jnp
from jax.experimental import pallas as pl
from jax.experimental.pallas import tpu as pltpu


def _round_up(x, m):
    return ((x + m - 1) // m) * m


# ----------------------------- Pallas kernel ------------------------------ #
def _patch_embed_kernel(p_ref, w_ref, b_ref, o_ref):
    # p_ref: (TM, K) bf16 patch rows
    # w_ref: (K, E)  bf16 flattened conv weight (transposed), resident
    # b_ref: (1, E)  f32 bias, resident
    # o_ref: (TM, E) bf16 output
    acc = jnp.dot(p_ref[...], w_ref[...], preferred_element_type=jnp.float32)
    o_ref[...] = (acc + b_ref[...]).astype(o_ref.dtype)


def _patch_matmul(patches, w_t, bias, *, tm=1024):
    """patches: (M, K) bf16, w_t: (K, E) bf16, bias: (1, E) f32 -> (M, E) bf16.

    M need not be a multiple of tm: grid uses pl.cdiv and Pallas masks the
    ragged final block (no HBM-level pad/slice over the row dimension).
    """
    M, K = patches.shape
    E = w_t.shape[1]

    # Large row tile to amortize the ~0.35us per-grid-step overhead, but cap at
    # ceil(M/2) (rounded up to the 8-sublane granule) so the 1-D "parallel"
    # grid always has >= 2 steps -> both v7x TensorCores get work. For big M
    # this still yields many steps per core.
    tm = max(8, min(tm, _round_up(-(-M // 2), 8)))
    grid = (pl.cdiv(M, tm),)

    flops = 2 * M * K * E
    bytes_accessed = M * K * 2 + K * E * 2 + E * 4 + M * E * 2

    return pl.pallas_call(
        _patch_embed_kernel,
        out_shape=jax.ShapeDtypeStruct((M, E), jnp.bfloat16),
        grid_spec=pltpu.PrefetchScalarGridSpec(
            num_scalar_prefetch=0,
            grid=grid,
            in_specs=[
                pl.BlockSpec((tm, K), lambda i: (i, 0)),
                # w_t / bias use a constant block index -> copied into VMEM
                # once and stay resident across grid steps.
                pl.BlockSpec((K, E), lambda i: (0, 0)),
                pl.BlockSpec((1, E), lambda i: (0, 0)),
            ],
            out_specs=pl.BlockSpec((tm, E), lambda i: (i, 0)),
        ),
        compiler_params=pltpu.CompilerParams(
            dimension_semantics=("parallel",),
            # Explicit scoped-VMEM budget: plenty for tm=1024 tiles at
            # video-ViT scale, within physical VMEM on v5e/v6e/v7x.
            vmem_limit_bytes=32 * 1024 * 1024,
        ),
        cost_estimate=pl.CostEstimate(
            flops=flops, transcendentals=0, bytes_accessed=bytes_accessed),
    )(patches, w_t, bias)


# ------------------------ AdaptivePadding semantics ------------------------ #
def adaptive_padding(x, kernel_size, stride, dilation=(1, 1, 1),
                     padding="corner"):
    """AdaptivePadding.forward: x (B, C, T, H, W), zero-pad so every output
    position of a (kernel, stride, dilation) filter is fully covered.
    'corner' pads bottom/right/end; 'same' pads symmetrically (TF SAME)."""
    assert padding in ("corner", "same")
    _, _, t, h, w = x.shape
    kd, kh, kw = kernel_size
    sd, sh, sw = stride
    dd, dh, dw = dilation
    od, oh, ow = math.ceil(t / sd), math.ceil(h / sh), math.ceil(w / sw)
    pad_d = max((od - 1) * sd + (kd - 1) * dd + 1 - t, 0)
    pad_h = max((oh - 1) * sh + (kh - 1) * dh + 1 - h, 0)
    pad_w = max((ow - 1) * sw + (kw - 1) * dw + 1 - w, 0)
    if pad_d > 0 or pad_h > 0 or pad_w > 0:
        if padding == "corner":
            pads = ((0, 0), (0, 0), (0, pad_d), (0, pad_h), (0, pad_w))
        else:  # "same"
            pads = ((0, 0), (0, 0),
                    (pad_d // 2, pad_d - pad_d // 2),
                    (pad_h // 2, pad_h - pad_h // 2),
                    (pad_w // 2, pad_w - pad_w // 2))
        x = jnp.pad(x, pads)
    return x


# --------------------------- PatchEmbed3D module --------------------------- #
def patch_embed_3d(x, weight, bias, kernel_size=(2, 4, 4), stride=(2, 4, 4),
                   padding="corner", tm=1024):
    """Adaptive pad + non-overlapping Conv3d patch embedding.

    Args:
      x:      (B, C, T, H, W) float32  (PyTorch NCDHW layout)
      weight: (E, C, kd, kh, kw) float32  (PyTorch Conv3d weight layout)
      bias:   (E,) float32
    Returns:
      (out, out_size) with out: (B, T_out*H_out*W_out, E) bfloat16,
      out_size = (T_out, H_out, W_out).
    """
    kd, kh, kw = kernel_size
    assert kernel_size == stride, "uses kernel_size == stride"
    x = adaptive_padding(x, kernel_size, stride, padding=padding)
    B, C, Tp, Hp, Wp = x.shape
    t_out, h_out, w_out = Tp // kd, Hp // kh, Wp // kw

    N = t_out * h_out * w_out
    K = C * kd * kh * kw
    E = weight.shape[0]

    # Patch extraction (plain JAX). The pad/reshape/transpose/cast chain is one
    # XLA fusion that writes a CONTIGUOUS bf16 (M, K) array; the Pallas kernel
    # then reads it with large, unit-stride DMAs. No K padding (masked vld is
    # cheaper than writing + re-reading padded columns while HBM-bound).
    # Feature order (C, kd, kh, kw) matches the Conv3d weight flatten.
    xr = x.reshape(B, C, t_out, kd, h_out, kh, w_out, kw)
    xr = xr.transpose(0, 2, 4, 6, 1, 3, 5, 7)
    patches = xr.reshape(B * N, K).astype(jnp.bfloat16)

    w_t = weight.reshape(E, K).T.astype(jnp.bfloat16)           # (K, E)
    b2 = bias.reshape(1, E).astype(jnp.float32)                 # (1, E)

    out = _patch_matmul(patches, w_t, b2, tm=tm)                # (B*N, E) bf16
    out = out.reshape(B, N, E)                                  # metadata-only
    return out, (t_out, h_out, w_out)


# --------------------------------- main ------------------------------------ #
if __name__ == "__main__":
    # Small, module-consistent shapes.
    B, C, T, H, W = 2, 3, 5, 18, 16          # T=5, H=18 exercise corner padding
    embed_dims = 32
    kernel_size = (2, 4, 4)
    stride = (2, 4, 4)

    key = jax.random.PRNGKey(0)
    kx, kw_, kb = jax.random.split(key, 3)
    x = jax.random.normal(kx, (B, C, T, H, W), dtype=jnp.float32)

    # Deterministic parameter init (Conv3d weight/bias shapes).
    kd, kh, kw = kernel_size
    fan_in = C * kd * kh * kw
    weight = jax.random.normal(
        kw_, (embed_dims, C, kd, kh, kw), dtype=jnp.float32) / math.sqrt(fan_in)
    bias = jax.random.normal(kb, (embed_dims,), dtype=jnp.float32) * 0.01

    fwd = jax.jit(functools.partial(
        patch_embed_3d, kernel_size=kernel_size, stride=stride))
    out, out_size = fwd(x, weight, bias)
    out = jax.block_until_ready(out)

    # AdaptivePadding semantics sanity checks ('corner' and 'same' shapes).
    x_pad = adaptive_padding(x, kernel_size, stride, padding="corner")
    x_same = adaptive_padding(x, kernel_size, stride, padding="same")
    assert x_pad.shape == (B, C, 6, 20, 16)
    assert x_same.shape == x_pad.shape

    # Cross-check against XLA's Conv3d on the adaptively padded input.
    # Reference uses the same bf16-rounded inputs with f32 accumulation; the
    # kernel additionally rounds the final result to bf16.
    ref = jax.lax.conv_general_dilated(
        x_pad.astype(jnp.bfloat16), weight.astype(jnp.bfloat16),
        window_strides=stride, padding="VALID",
        dimension_numbers=("NCDHW", "OIDHW", "NCDHW"),
        preferred_element_type=jnp.float32)
    ref = ref + bias.reshape(1, embed_dims, 1, 1, 1)
    ref = ref.reshape(B, embed_dims, -1).transpose(0, 2, 1)

    n_tokens = int(out_size[0]) * int(out_size[1]) * int(out_size[2])
    assert out.shape == (B, n_tokens, embed_dims)
    assert out.dtype == jnp.bfloat16
    assert jnp.allclose(out.astype(jnp.float32), ref, atol=3e-2, rtol=3e-2)

    print("KERNEL_OK")
</pallas_src>

<mosaic_0001>
module attributes {stable_mosaic.version = 11 : i64} {
  func.func @_patch_embed_kernel(%arg0: i32, %arg1: memref<64x96xbf16, #tpu.memory_space<vmem>>, %arg2: memref<96x32xbf16, #tpu.memory_space<vmem>>, %arg3: memref<1x32xf32, #tpu.memory_space<vmem>>, %arg4: memref<64x32xbf16, #tpu.memory_space<vmem>>) attributes {dimension_semantics = [#tpu.dimension_semantics<parallel>], iteration_bounds = array<i64: 2>, scalar_prefetch = 0 : i64, scratch_operands = 0 : i64, tpu.core_type = #tpu.core_type<tc>, window_params = [{transform_indices = @transform_0, window_bounds = array<i64: 64, 96>}, {pipeline_mode = #tpu.pipeline_mode<synchronous>, transform_indices = @transform_1, window_bounds = array<i64: 96, 32>}, {pipeline_mode = #tpu.pipeline_mode<synchronous>, transform_indices = @transform_2, window_bounds = array<i64: 1, 32>}, {transform_indices = @transform_3, window_bounds = array<i64: 64, 32>}]} {
    %c0 = arith.constant 0 : index
    %c0_0 = arith.constant 0 : index
    %0 = vector.load %arg1[%c0, %c0_0] : memref<64x96xbf16, #tpu.memory_space<vmem>>, vector<64x96xbf16>
    %c0_1 = arith.constant 0 : index
    %c0_2 = arith.constant 0 : index
    %1 = vector.load %arg2[%c0_1, %c0_2] : memref<96x32xbf16, #tpu.memory_space<vmem>>, vector<96x32xbf16>
    %cst = arith.constant dense<0.000000e+00> : vector<64x32xf32>
    %2 = tpu.matmul %0, %1, %cst {dimension_numbers = #tpu.dot_dimension_numbers<[1], [0], [0], [1], [0, 0, 1, 1], [], []>} : vector<64x96xbf16>, vector<96x32xbf16>, vector<64x32xf32> -> vector<64x32xf32>
    %c0_3 = arith.constant 0 : index
    %c0_4 = arith.constant 0 : index
    %3 = vector.load %arg3[%c0_3, %c0_4] : memref<1x32xf32, #tpu.memory_space<vmem>>, vector<1x32xf32>
    %4 = vector.broadcast %3 : vector<1x32xf32> to vector<64x32xf32>
    %5 = arith.addf %2, %4 : vector<64x32xf32>
    %6 = arith.truncf %5 : vector<64x32xf32> to vector<64x32xbf16>
    %c0_5 = arith.constant 0 : index
    %c0_6 = arith.constant 0 : index
    %7 = vector.load %arg4[%c0_5, %c0_6] : memref<64x32xbf16, #tpu.memory_space<vmem>>, vector<64x32xbf16>
    tpu.vector_store %arg4[%c0_5, %c0_6], %6 {strides = array<i32>} : memref<64x32xbf16, #tpu.memory_space<vmem>>, vector<64x32xbf16>,
    return
  }
  func.func @transform_0(%arg0: i32) -> (i32, i32) {
    %c0_i32 = arith.constant 0 : i32
    %c0_i32_0 = arith.constant 0 : i32
    return %arg0, %c0_i32 : i32, i32
  }
  func.func @transform_1(%arg0: i32) -> (i32, i32) {
    %c0_i32 = arith.constant 0 : i32
    %c0_i32_0 = arith.constant 0 : i32
    %c0_i32_1 = arith.constant 0 : i32
    return %c0_i32, %c0_i32_0 : i32, i32
  }
  func.func @transform_2(%arg0: i32) -> (i32, i32) {
    %c0_i32 = arith.constant 0 : i32
    %c0_i32_0 = arith.constant 0 : i32
    %c0_i32_1 = arith.constant 0 : i32
    return %c0_i32, %c0_i32_0 : i32, i32
  }
  func.func @transform_3(%arg0: i32) -> (i32, i32) {
    %c0_i32 = arith.constant 0 : i32
    %c0_i32_0 = arith.constant 0 : i32
    return %arg0, %c0_i32 : i32, i32
  }
}

</mosaic_0001>

<llo_original>
// kernel: patch_embed_3d.1
$region0: #{patch_embed_3d.1}
  #allocation0 [shape = 'u32[]', space=smem, size = 0x4, offset = 0x4, fixed_abs, tag = 'smem constant byte address 0x4 - core index']
  #allocation1 [shape = 'u32[72,128]{1,0:T(1,128)}', space=vmem, size = 0x9000, scoped, tag = 'internal scratch']
  %s0 = inlined_call_operand.vmem [shape: bf16[120,96], index: 0, kind: input, shape index: {}]
  %s1 = inlined_call_operand.vmem [shape: bf16[96,32], index: 1, kind: input, shape index: {}]
  %s2 = inlined_call_operand.vmem [shape: f32[1,32], index: 2, kind: input, shape index: {}]
  %s3 = inlined_call_operand.vmem [shape: bf16[120,32], index: 3, kind: output, shape index: {}]
  %s4 = sld [smem:[#allocation0]]
  $region89: #{patch_embed_3d.1} parent=0
    _
  %s6 = ssub.s32 1, %s4
  %s7 = scalar_select 0, %s6, %s4
  $region1: #{patch_embed_3d.1} parent=0
    #allocation2 [shape = 'u8[32768]{0}', space=vmem, size = 0x8000, scoped, tag = 'output window, operand 0']
    loop: start=0, step=1, limit=4
    $region2: #{patch_embed_3d.1} parent=1 // loop_pre_header
      _
    $region3: #{patch_embed_3d.1} parent=1 // loop_header
      %s9 = sphi 0, %s13
      %p10 = scmp.ge.s32.totalorder %s9, 4
      %s19 = sphi 0, %s21
      %s22 = sphi 0, %s19
      %s23 = sphi 0, %s22
      %s39 = sphi 0, %s23
      %s43 = sphi 0, %s43
      %s45 = sphi 0, %s43
      %s46 = sphi 0, %s45
      %s60 = sphi 0, %s46
      %s64 = sphi 0, %s64
      %s66 = sphi 0, %s64
      %s67 = sphi 0, %s66
      %s81 = sphi 0, %s67
      %s87 = sphi 0, %s89
      %s90 = sphi 0, %s87
      %s91 = sphi 0, %s90
      %s107 = sphi 0, %s91
    $region4: #{patch_embed_3d.1} parent=1 // loop_header_branch
      %12 = sbr.rel (%p10) target = $region8
    $region5: #{patch_embed_3d.1} parent=1 // loop_body
      %s14 = ssub.s32 %s9, 1
      %s15 = ssub.s32 %s9, 2
      %s16 = sadd.s32 %s9, 1
      %s17 = ssub.s32 %s9, %s16
      %p18 = scmp.eq.s32.totalorder %s17, 0
      %s20 = sadd.s32 %s19, 1
      %s21 = scalar_select %p18, %s19, %s20
      %p24 = pneg %p18
      %p25 = scmp.eq.s32.totalorder %s9, 1
      %p26 = por %p24, %p25
      %p27 = scmp.ne.s32.totalorder %s19, %s22
      %p28 = scmp.eq.s32.totalorder %s9, 0
      %p29 = por %p27, %p28
      %p30 = scmp.ne.s32.totalorder %s19, %s22
      %p31 = scmp.eq.s32.totalorder %s14, 1
      %p32 = por %p30, %p31
      %p33 = scmp.ne.s32.totalorder %s22, %s23
      %p34 = scmp.eq.s32.totalorder %s14, 0
      %p35 = por %p33, %p34
      %p36 = scmp.ne.s32.totalorder %s22, %s23
      %p37 = scmp.eq.s32.totalorder %s15, 1
      %p38 = por %p36, %p37
      %p40 = scmp.ne.s32.totalorder %s23, %s39
      %p41 = scmp.eq.s32.totalorder %s15, 0
      %p42 = por %p40, %p41
      %s44 = sadd.s32 %s43, 1
      %p47 = scmp.eq.s32.totalorder %s9, 1
      %p48 = scmp.ne.s32.totalorder %s43, %s45
      %p49 = scmp.eq.s32.totalorder %s9, 0
      %p50 = por %p48, %p49
      %p51 = scmp.ne.s32.totalorder %s43, %s45
      %p52 = scmp.eq.s32.totalorder %s14, 1
      %p53 = por %p51, %p52
      %p54 = scmp.ne.s32.totalorder %s45, %s46
      %p55 = scmp.eq.s32.totalorder %s14, 0
      %p56 = por %p54, %p55
      %p57 = scmp.ne.s32.totalorder %s45, %s46
      %p58 = scmp.eq.s32.totalorder %s15, 1
      %p59 = por %p57, %p58
      %p61 = scmp.ne.s32.totalorder %s46, %s60
      %p62 = scmp.eq.s32.totalorder %s15, 0
      %p63 = por %p61, %p62
      %s65 = sadd.s32 %s64, 1
      %p68 = scmp.eq.s32.totalorder %s9, 1
      %p69 = scmp.ne.s32.totalorder %s64, %s66
      %p70 = scmp.eq.s32.totalorder %s9, 0
      %p71 = por %p69, %p70
      %p72 = scmp.ne.s32.totalorder %s64, %s66
      %p73 = scmp.eq.s32.totalorder %s14, 1
      %p74 = por %p72, %p73
      %p75 = scmp.ne.s32.totalorder %s66, %s67
      %p76 = scmp.eq.s32.totalorder %s14, 0
      %p77 = por %p75, %p76
      %p78 = scmp.ne.s32.totalorder %s66, %s67
      %p79 = scmp.eq.s32.totalorder %s15, 1
      %p80 = por %p78, %p79
      %p82 = scmp.ne.s32.totalorder %s67, %s81
      %p83 = scmp.eq.s32.totalorder %s15, 0
      %p84 = por %p82, %p83
      %s85 = ssub.s32 %s9, %s16
      %p86 = scmp.eq.s32.totalorder %s85, 0
      %s88 = sadd.s32 %s87, 1
      %s89 = scalar_select %p86, %s87, %s88
      %p92 = pneg %p86
      %p93 = scmp.eq.s32.totalorder %s9, 1
      %p94 = por %p92, %p93
      %p95 = scmp.ne.s32.totalorder %s87, %s90
      %p96 = scmp.eq.s32.totalorder %s9, 0
      %p97 = por %p95, %p96
      %p98 = scmp.ne.s32.totalorder %s87, %s90
      %p99 = scmp.eq.s32.totalorder %s14, 1
      %p100 = por %p98, %p99
      %p101 = scmp.ne.s32.totalorder %s90, %s91
      %p102 = scmp.eq.s32.totalorder %s14, 0
      %p103 = por %p101, %p102
      %p104 = scmp.ne.s32.totalorder %s90, %s91
      %p105 = scmp.eq.s32.totalorder %s15, 1
      %p106 = por %p104, %p105
      %p108 = scmp.ne.s32.totalorder %s91, %s107
      %p109 = scmp.eq.s32.totalorder %s15, 0
      %p110 = por %p108, %p109
      %p111 = scmp.le.s32.totalorder 1, %s9
      %p112 = scmp.lt.s32.totalorder %s9, 3
      %p113 = pnand %p111, %p112
      %p114 = pneg %p113
      // Predicated region
      $region9: #{patch_embed_3d.1} parent=5 // pred_check
        _
      $region10: #{patch_embed_3d.1} parent=5 // pred_check_branch
        %116 = sbr.rel (%p113) target = $region12
      $region11: #{patch_embed_3d.1} parent=5 // pred_region
        %s117 = ssub.s32 %s9, 1
        // Predicated region
        $region13: #{patch_embed_3d.1} parent=11 // pred_check
          %p118 = pneg %p56
        $region14: #{patch_embed_3d.1} parent=11 // pred_check_branch
          %120 = sbr.rel (%p118) target = $region16
        $region15: #{patch_embed_3d.1} parent=11 // pred_region
          _
        $region16: #{patch_embed_3d.1} parent=11 // pred_fallthru
          _
        // Predicated region
        $region17: #{patch_embed_3d.1} parent=11 // pred_check
          %p121 = pneg %p77
        $region18: #{patch_embed_3d.1} parent=11 // pred_check_branch
          %123 = sbr.rel (%p121) target = $region20
        $region19: #{patch_embed_3d.1} parent=11 // pred_region
          _
        $region20: #{patch_embed_3d.1} parent=11 // pred_fallthru
          _
      $region12: #{patch_embed_3d.1} parent=5 // pred_fallthru
        _
      %p124 = scmp.lt.s32.totalorder %s9, 2
      // Predicated region
      $region21: #{patch_embed_3d.1} parent=5 // pred_check
        %p125 = pneg %p124
      $region22: #{patch_embed_3d.1} parent=5 // pred_check_branch
        %127 = sbr.rel (%p125) target = $region24
      $region23: #{patch_embed_3d.1} parent=5 // pred_region
        // Predicated region
        $region25: #{patch_embed_3d.1} parent=23 // pred_check
          %p128 = pneg %p29
        $region26: #{patch_embed_3d.1} parent=23 // pred_check_branch
          %130 = sbr.rel (%p128) target = $region28
        $region27: #{patch_embed_3d.1} parent=23 // pred_region
          %s131 = smul.u32 8, %s9
          %s132 = ssub.s32 15, %s131
          %p133 = scmp.lt.s32.totalorder %s132, 8
          %s134 = scalar_select %p133, %s132, 8
          %s135 = smul.u32 4, %s134
          %p136 = scmp.lt.s32.totalorder %s131, 14
          %s137 = scalar_select %p136, %s131, 14
          %s138 = smul.addr %s137, 4
          %s139 = scalar_lea.vmem %s0, %s138
          %s140 = smul.u32 8, %s9
          %s141 = ssub.s32 15, %s140
          %p142 = scmp.lt.s32.totalorder %s141, 8
          %s143 = scalar_select %p142, %s141, 8
          %s144 = smul.u32 4, %s143
        $region28: #{patch_embed_3d.1} parent=23 // pred_fallthru
          _
      $region24: #{patch_embed_3d.1} parent=5 // pred_fallthru
        _
      %p145 = scmp.le.s32.totalorder 1, %s9
      %p146 = scmp.lt.s32.totalorder %s9, 3
      %p147 = pnand %p145, %p146
      %p148 = pneg %p147
      // Predicated region
      $region29: #{patch_embed_3d.1} parent=5 // pred_check
        _
      $region30: #{patch_embed_3d.1} parent=5 // pred_check_branch
        %150 = sbr.rel (%p147) target = $region32
      $region31: #{patch_embed_3d.1} parent=5 // pred_region
        %s151 = ssub.s32 %s9, 1
        %s152 = smul.u32 8, %s14
        %s153 = ssub.s32 15, %s152
        %p154 = scmp.lt.s32.totalorder %s153, 8
        %s155 = scalar_select %p154, %s153, 8
        %s156 = smul.u32 4, %s155
        %p157 = scmp.lt.s32.totalorder %s152, 14
        %s158 = scalar_select %p157, %s152, 14
        %s159 = smul.addr %s158, 4
        %s160 = scalar_lea.vmem %s0, %s159
        %p161 = pneg %p35
        %p162 = pneg %p32
        %p163 = pneg %p56
        %p164 = pneg %p53
        %p165 = pneg %p77
        %p166 = pneg %p74
        %p167 = pneg %p103
        %p168 = pneg %p100
        %s169 = sand.u32 %s90, 1
        %s170 = sand.u32 %s90, 1
        %s171 = smul.addr %s170, 32
        %s172 = scalar_lea.vmem [#allocation2], %s171
        %s173 = smul.u32 8, %s14
        %s174 = ssub.s32 15, %s173
        %p175 = scmp.lt.s32.totalorder %s174, 8
        %s176 = scalar_select %p175, %s174, 8
        %s177 = smul.u32 4, %s176
        %p178 = scmp.lt.s32.totalorder %s173, 14
        %s179 = scalar_select %p178, %s173, 14
        %s180 = smul.addr %s179, 4
        %s181 = scalar_lea.vmem %s0, %s180
        %s182 = smul.u32 8, %s14
        %s183 = ssub.s32 15, %s182
        %p184 = scmp.lt.s32.totalorder %s183, 8
        %s185 = scalar_select %p184, %s183, 8
        %s186 = smul.u32 4, %s185
        %s187 = smul.u32 8, %s14
        %s188 = ssub.s32 15, %s187
        %p189 = scmp.lt.s32.totalorder %s188, 8
        %s190 = scalar_select %p189, %s188, 8
        %s191 = smul.u32 4, %s190
        %v193 = vld [vmem:[%s181] sm:$0xf]
        %v194 = vld [vmem:[%s181 + $0x4] sm:$0xf]
        %v195 = vld [vmem:[%s181 + $0x8] sm:$0xf]
        %v196 = vld [vmem:[%s181 + $0xc] sm:$0xf]
        %v197 = vld [vmem:[%s181 + $0x10] sm:$0xf]
        %v198 = vld [vmem:[%s181 + $0x14] sm:$0xf]
        %v199 = vld [vmem:[%s181 + $0x18] sm:$0xf]
        %v200 = vld [vmem:[%s181 + $0x1c] sm:$0xf]
        %v201 = vld [vmem:[%s1] sm:$0xf]
        %v202 = vld [vmem:[%s1 + $0x4] sm:$0xf]
        %v203 = vld [vmem:[%s1 + $0x8] sm:$0xf]
        %v204 = vld [vmem:[%s1 + $0xc] sm:$0xf]
        %v205 = vld [vmem:[%s1 + $0x10] sm:$0xf]
        %v206 = vld [vmem:[%s1 + $0x14] sm:$0xf]
        %v207 = vld [vmem:[%s1 + $0x18] sm:$0xf]
        %v208 = vld [vmem:[%s1 + $0x1c] sm:$0xf]
        %v209 = vld [vmem:[%s1 + $0x20] sm:$0xf]
        %v210 = vld [vmem:[%s1 + $0x24] sm:$0xf]
        %v211 = vld [vmem:[%s1 + $0x28] sm:$0xf]
        %v212 = vld [vmem:[%s1 + $0x2c] sm:$0xf]
        %v213 = vld [vmem:[%s2] sm:$0x1]
        %v215 = vperm.slane %v213, 0
        %v225 = vunpack.c.l.b16 %v193
        %v226 = vunpack.c.l.b16 %v194
        %v227 = vunpack.c.l.b16 %v195
        %v228 = vunpack.c.l.b16 %v196
        %v229 = vunpack.c.l.b16 %v197
        %v230 = vunpack.c.l.b16 %v198
        %v231 = vunpack.c.l.b16 %v199
        %v232 = vunpack.c.l.b16 %v200
        %v233 = vpack.c.b16 %v226, %v225
        %v234 = vpack.c.b16 %v228, %v227
        %v235 = vpack.c.b16 %v230, %v229
        %v236 = vpack.c.b16 %v232, %v231
        %v249 = vunpack.c.l.b16 %v201
        %v250 = vunpack.c.l.b16 %v202
        %v251 = vunpack.c.l.b16 %v203
        %v252 = vunpack.c.l.b16 %v204
        %v253 = vunpack.c.l.b16 %v205
        %v254 = vunpack.c.l.b16 %v206
        %v255 = vunpack.c.l.b16 %v207
        %v256 = vunpack.c.l.b16 %v208
        %v257 = vunpack.c.l.b16 %v209
        %v258 = vunpack.c.l.b16 %v210
        %v259 = vunpack.c.l.b16 %v211
        %v260 = vunpack.c.l.b16 %v212
        %v261 = vpack.c.b16 %v250, %v249
        %v262 = vpack.c.b16 %v252, %v251
        %v263 = vpack.c.b16 %v254, %v253
        %v264 = vpack.c.b16 %v256, %v255
        %v265 = vpack.c.b16 %v258, %v257
        %v266 = vpack.c.b16 %v260, %v259
        %vm273 = vcmask 785408
        %v275 = vsel %vm273, %v233, 0
        %v278 = vsel %vm273, %v234, 0
        %v281 = vsel %vm273, %v235, 0
        %v284 = vsel %vm273, %v236, 0
        %286 = vmatpush.bf16.msra.mxu0 0
        %287 = vmatpush.bf16.msra.mxu0 0
        %288 = vmatpush.bf16.msra.mxu0 %v266
        %289 = vmatpush.bf16.msra.mxu0 %v265
        %290 = vmatpush.bf16.msra.mxu0 %v264
        %291 = vmatpush.bf16.msra.mxu0 %v263
        %292 = vmatpush.bf16.msra.mxu0 %v262
        %293 = vmatpush.bf16.msra.mxu0 %v261
        %294 = vmatmul.bf16.gmra.mxu0 %v275
        %v295 = vpop.f32.mrf.mxu0
        %v296 = vadd.f32 %v215, %v295
        %v297 = vpop.f32.mrf.mxu0
        %v298 = vadd.f32 %v215, %v297
        %299 = vmatmul.bf16.gmra.mxu0 %v278
        %v300 = vpop.f32.mrf.mxu0
        %v301 = vadd.f32 %v215, %v300
        %v302 = vpop.f32.mrf.mxu0
        %v303 = vadd.f32 %v215, %v302
        %304 = vmatmul.bf16.gmra.mxu0 %v281
        %v305 = vpop.f32.mrf.mxu0
        %v306 = vadd.f32 %v215, %v305
        %v307 = vpop.f32.mrf.mxu0
        %v308 = vadd.f32 %v215, %v307
        %309 = vmatmul.bf16.gmra.mxu0 %v284
        %v310 = vpop.f32.mrf.mxu0
        %v311 = vadd.f32 %v215, %v310
        %v312 = vpop.f32.mrf.mxu0
        %v313 = vadd.f32 %v215, %v312
        %314 = vdwg.mxu0
        %v315 = vpack.c.bf16 %v296, %v296
        %v316 = vpack.c.bf16 %v298, %v298
        %v317 = vpack.c.bf16 %v301, %v301
        %v318 = vpack.c.bf16 %v303, %v303
        %v319 = vpack.c.bf16 %v306, %v306
        %v320 = vpack.c.bf16 %v308, %v308
        %v321 = vpack.c.bf16 %v311, %v311
        %v322 = vpack.c.bf16 %v313, %v313
        %vm323 = vcmask 257024
        %324 = vst.msk [vmem:[%s172] sm:$0xf] %vm323, %v315
        %325 = vst.msk [vmem:[%s172 + $0x4] sm:$0xf] %vm323, %v316
        %326 = vst.msk [vmem:[%s172 + $0x8] sm:$0xf] %vm323, %v317
        %327 = vst.msk [vmem:[%s172 + $0xc] sm:$0xf] %vm323, %v318
        %328 = vst.msk [vmem:[%s172 + $0x10] sm:$0xf] %vm323, %v319
        %329 = vst.msk [vmem:[%s172 + $0x14] sm:$0xf] %vm323, %v320
        %330 = vst.msk [vmem:[%s172 + $0x18] sm:$0xf] %vm323, %v321
        %331 = vst.msk [vmem:[%s172 + $0x1c] sm:$0xf] %vm323, %v322
        %s332 = sand.u32 %s90, 1
        %s333 = sand.u32 %s90, 1
        %s334 = smul.addr %s333, 32
        %s335 = scalar_lea.vmem [#allocation2], %s334
        // Predicated region
        $region33: #{patch_embed_3d.1} parent=31 // pred_check
          %p336 = pneg %p100
        $region34: #{patch_embed_3d.1} parent=31 // pred_check_branch
          %338 = sbr.rel (%p336) target = $region36
        $region35: #{patch_embed_3d.1} parent=31 // pred_region
          %s339 = smul.u32 8, %s14
          %s340 = ssub.s32 15, %s339
          %p341 = scmp.lt.s32.totalorder %s340, 8
          %s342 = scalar_select %p341, %s340, 8
          %s343 = smul.u32 4, %s342
          %p344 = scmp.ne.s32.totalorder 0, %s343
          %s345 = smul.addr %s339, 4
          %s346 = scalar_lea.vmem %s3, %s345
          // Predicated region
          $region37: #{patch_embed_3d.1} parent=35 // pred_check
            %p347 = pneg %p344
          $region38: #{patch_embed_3d.1} parent=35 // pred_check_branch
            %349 = sbr.rel (%p347) target = $region40
          $region39: #{patch_embed_3d.1} parent=35 // pred_region
            // Predicated region
            $region41: #{patch_embed_3d.1} parent=39 // pred_check
              _
            $region42: #{patch_embed_3d.1} parent=39 // pred_check_branch
              %351 = sbr.rel target = $region44
            $region43: #{patch_embed_3d.1} parent=39 // pred_region
              // Predicated region
              $region63: #{patch_embed_3d.1} parent=43 // pred_check
                _
              $region64: #{patch_embed_3d.1} parent=43 // pred_check_branch
                %415 = sbr.rel (0) target = $region66
              $region65: #{patch_embed_3d.1} parent=43 // pred_region
                %s417 = ssub.s32 16, 1
                %s418 = sshrl.u32 %s342, 3
                // While loop
                $region67: #{patch_embed_3d.1} parent=65 // loop_pre_header
                  _
                $region68: #{patch_embed_3d.1} parent=65 // loop_header
                  %s420 = sphi 0, %s422
                  %p421 = scmp.ge.s32.totalorder %s420, %s418
                  %s425 = sphi 0, %s446
                  %s426 = sphi %s335, %s449
                  %s427 = sphi %s346, %s450
                $region69: #{patch_embed_3d.1} parent=65 // loop_header_branch
                  %424 = sbr.rel (%p421) target = $region73
                $region70: #{patch_embed_3d.1} parent=65 // loop_body
                  %v428 = vld [vmem:[%s426] sm:%s417]
                  %429 = vst [vmem:[%s427] sm:%s417] %v428
                  %v430 = vld [vmem:[%s426 + $0x4] sm:%s417]
                  %431 = vst [vmem:[%s427 + $0x4] sm:%s417] %v430
                  %v432 = vld [vmem:[%s426 + $0x8] sm:%s417]
                  %433 = vst [vmem:[%s427 + $0x8] sm:%s417] %v432
                  %v434 = vld [vmem:[%s426 + $0xc] sm:%s417]
                  %435 = vst [vmem:[%s427 + $0xc] sm:%s417] %v434
                  %v436 = vld [vmem:[%s426 + $0x10] sm:%s417]
                  %437 = vst [vmem:[%s427 + $0x10] sm:%s417] %v436
                  %v438 = vld [vmem:[%s426 + $0x14] sm:%s417]
                  %439 = vst [vmem:[%s427 + $0x14] sm:%s417] %v438
                  %v440 = vld [vmem:[%s426 + $0x18] sm:%s417]
                  %441 = vst [vmem:[%s427 + $0x18] sm:%s417] %v440
                  %v442 = vld [vmem:[%s426 + $0x1c] sm:%s417]
                  %443 = vst [vmem:[%s427 + $0x1c] sm:%s417] %v442
                  %s444 = sadd.s32 1, %s425
                  %p445 = scmp.ge.s32.totalorder %s444, %s418
                  %s446 = scalar_select %p445, 0, %s444
                  %s447 = smul.u32 %s446, 32
                  %s448 = smul.u32 %s446, 32
                  %s449 = scalar_lea.vmem %s335, %s447 [#allocation2]
                  %s450 = scalar_lea.vmem %s346, %s448
                $region71: #{patch_embed_3d.1} parent=65 // loop_footer
                  %s422 = sadd.s32 %s420, 1
                $region72: #{patch_embed_3d.1} parent=65 // loop_footer_branch
                  %419 = sbr.rel target = $region68
                $region73: #{patch_embed_3d.1} parent=65 // loop_exit
                  _
                %s451 = sshrl.u32 %s342, 3
                %s452 = sand.u32 %s342, 7
                %s453 = smul.u32 %s451, 8
                %s454 = smul.u32 4, %s453
                %s455 = scalar_lea.vmem %s335, %s454 [#allocation2]
                %s456 = smul.u32 4, %s453
                %s457 = scalar_lea.vmem %s346, %s456
                // While loop
                $region74: #{patch_embed_3d.1} parent=65 // loop_pre_header
                  _
                $region75: #{patch_embed_3d.1} parent=65 // loop_header
                  %s459 = sphi 0, %s461
                  %p460 = scmp.ge.s32.totalorder %s459, %s452
                  %s464 = sphi 0, %s471
                  %s465 = sphi %s455, %s474
                  %s466 = sphi %s457, %s475
                $region76: #{patch_embed_3d.1} parent=65 // loop_header_branch
                  %463 = sbr.rel (%p460) target = $region80
                $region77: #{patch_embed_3d.1} parent=65 // loop_body
                  %v467 = vld [vmem:[%s465] sm:%s417]
                  %468 = vst [vmem:[%s466] sm:%s417] %v467
                  %s469 = sadd.s32 1, %s464
                  %p470 = scmp.ge.s32.totalorder %s469, %s452
                  %s471 = scalar_select %p470, 0, %s469
                  %s472 = smul.u32 %s471, 4
                  %s473 = smul.u32 %s471, 4
                  %s474 = scalar_lea.vmem %s455, %s472 [#allocation2]
                  %s475 = scalar_lea.vmem %s457, %s473
                $region78: #{patch_embed_3d.1} parent=65 // loop_footer
                  %s461 = sadd.s32 %s459, 1
                $region79: #{patch_embed_3d.1} parent=65 // loop_footer_branch
                  %458 = sbr.rel target = $region75
                $region80: #{patch_embed_3d.1} parent=65 // loop_exit
                  _
              $region66: #{patch_embed_3d.1} parent=43 // pred_fallthru
                _
            $region44: #{patch_embed_3d.1} parent=39 // pred_fallthru
              _
            // Predicated region
            $region45: #{patch_embed_3d.1} parent=39 // pred_check
              _
            $region46: #{patch_embed_3d.1} parent=39 // pred_check_branch
              %353 = sbr.rel (0) target = $region48
            $region47: #{patch_embed_3d.1} parent=39 // pred_region
              %s355 = ssub.s32 16, 1
              %s356 = sshrl.u32 %s342, 3
              // While loop
              $region49: #{patch_embed_3d.1} parent=47 // loop_pre_header
                _
              $region50: #{patch_embed_3d.1} parent=47 // loop_header
                %s358 = sphi 0, %s360
                %p359 = scmp.ge.s32.totalorder %s358, %s356
                %s363 = sphi 0, %s384
                %s364 = sphi %s335, %s387
                %s365 = sphi %s346, %s388
              $region51: #{patch_embed_3d.1} parent=47 // loop_header_branch
                %362 = sbr.rel (%p359) target = $region55
              $region52: #{patch_embed_3d.1} parent=47 // loop_body
                %v366 = vld [vmem:[%s364] sm:%s355]
                %367 = vst [vmem:[%s365] sm:%s355] %v366
                %v368 = vld [vmem:[%s364 + $0x4] sm:%s355]
                %369 = vst [vmem:[%s365 + $0x4] sm:%s355] %v368
                %v370 = vld [vmem:[%s364 + $0x8] sm:%s355]
                %371 = vst [vmem:[%s365 + $0x8] sm:%s355] %v370
                %v372 = vld [vmem:[%s364 + $0xc] sm:%s355]
                %373 = vst [vmem:[%s365 + $0xc] sm:%s355] %v372
                %v374 = vld [vmem:[%s364 + $0x10] sm:%s355]
                %375 = vst [vmem:[%s365 + $0x10] sm:%s355] %v374
                %v376 = vld [vmem:[%s364 + $0x14] sm:%s355]
                %377 = vst [vmem:[%s365 + $0x14] sm:%s355] %v376
                %v378 = vld [vmem:[%s364 + $0x18] sm:%s355]
                %379 = vst [vmem:[%s365 + $0x18] sm:%s355] %v378
                %v380 = vld [vmem:[%s364 + $0x1c] sm:%s355]
                %381 = vst [vmem:[%s365 + $0x1c] sm:%s355] %v380
                %s382 = sadd.s32 1, %s363
                %p383 = scmp.ge.s32.totalorder %s382, %s356
                %s384 = scalar_select %p383, 0, %s382
                %s385 = smul.u32 %s384, 32
                %s386 = smul.u32 %s384, 32
                %s387 = scalar_lea.vmem %s335, %s385 [#allocation2]
                %s388 = scalar_lea.vmem %s346, %s386
              $region53: #{patch_embed_3d.1} parent=47 // loop_footer
                %s360 = sadd.s32 %s358, 1
              $region54: #{patch_embed_3d.1} parent=47 // loop_footer_branch
                %357 = sbr.rel target = $region50
              $region55: #{patch_embed_3d.1} parent=47 // loop_exit
                _
              %s389 = sshrl.u32 %s342, 3
              %s390 = sand.u32 %s342, 7
              %s391 = smul.u32 %s389, 8
              %s392 = smul.u32 4, %s391
              %s393 = scalar_lea.vmem %s335, %s392 [#allocation2]
              %s394 = smul.u32 4, %s391
              %s395 = scalar_lea.vmem %s346, %s394
              // While loop
              $region56: #{patch_embed_3d.1} parent=47 // loop_pre_header
                _
              $region57: #{patch_embed_3d.1} parent=47 // loop_header
                %s397 = sphi 0, %s399
                %p398 = scmp.ge.s32.totalorder %s397, %s390
                %s402 = sphi 0, %s409
                %s403 = sphi %s393, %s412
                %s404 = sphi %s395, %s413
              $region58: #{patch_embed_3d.1} parent=47 // loop_header_branch
                %401 = sbr.rel (%p398) target = $region62
              $region59: #{patch_embed_3d.1} parent=47 // loop_body
                %v405 = vld [vmem:[%s403] sm:%s355]
                %406 = vst [vmem:[%s404] sm:%s355] %v405
                %s407 = sadd.s32 1, %s402
                %p408 = scmp.ge.s32.totalorder %s407, %s390
                %s409 = scalar_select %p408, 0, %s407
                %s410 = smul.u32 %s409, 4
                %s411 = smul.u32 %s409, 4
                %s412 = scalar_lea.vmem %s393, %s410 [#allocation2]
                %s413 = scalar_lea.vmem %s395, %s411
              $region60: #{patch_embed_3d.1} parent=47 // loop_footer
                %s399 = sadd.s32 %s397, 1
              $region61: #{patch_embed_3d.1} parent=47 // loop_footer_branch
                %396 = sbr.rel target = $region57
              $region62: #{patch_embed_3d.1} parent=47 // loop_exit
                _
            $region48: #{patch_embed_3d.1} parent=39 // pred_fallthru
              _
          $region40: #{patch_embed_3d.1} parent=35 // pred_fallthru
            _
          %476 = vnop
        $region36: #{patch_embed_3d.1} parent=31 // pred_fallthru
          _
      $region32: #{patch_embed_3d.1} parent=5 // pred_fallthru
        _
      %p477 = scmp.le.s32.totalorder 2, %s9
      // Predicated region
      $region81: #{patch_embed_3d.1} parent=5 // pred_check
        %p478 = pneg %p477
      $region82: #{patch_embed_3d.1} parent=5 // pred_check_branch
        %480 = sbr.rel (%p478) target = $region84
      $region83: #{patch_embed_3d.1} parent=5 // pred_region
        %s481 = ssub.s32 %s9, 2
        // Predicated region
        $region85: #{patch_embed_3d.1} parent=83 // pred_check
          %p482 = pneg %p106
        $region86: #{patch_embed_3d.1} parent=83 // pred_check_branch
          %484 = sbr.rel (%p482) target = $region88
        $region87: #{patch_embed_3d.1} parent=83 // pred_region
          %s485 = sand.u32 %s91, 1
          %s486 = sand.u32 %s91, 1
          %s487 = smul.addr %s486, 32
          %s488 = scalar_lea.vmem [#allocation2], %s487
        $region88: #{patch_embed_3d.1} parent=83 // pred_fallthru
          _
      $region84: #{patch_embed_3d.1} parent=5 // pred_fallthru
        _
    $region6: #{patch_embed_3d.1} parent=1 // loop_footer
      %s13 = sadd.s32 1, %s9
    $region7: #{patch_embed_3d.1} parent=1 // loop_footer_branch
      %8 = sbr.rel target = $region3
    $region8: #{patch_embed_3d.1} parent=1 // loop_exit
      _

</llo_original>
